<compile_context>
chip_gen: v6e
topology: v6e:2x2x1
jax: 0.10.0
libtpu: 0.0.40
codegen_flags: <defaults>
</compile_context>

<pallas_src>
from typing import NamedTuple

import jax
import jax.numpy as jnp
from jax.experimental import pallas as pl
from jax.experimental.pallas import tpu as pltpu


def _round_up(v, m):
    return (v + m - 1) // m * m


class PreparedGCNAdj(NamedTuple):
    adj: jax.Array   # (np_rows, np_cols) int8: adj + I (residual folded), zero padded
    norm: jax.Array  # (np_rows, 1) float32: rsqrt(1 + deg), zero padded
    n: int
    tm: int
    tk: int


def prepare_gcn_adj(adj_t, *, tm=512, tk=1024):
    """Per-graph (x-independent) prep.  Cache / reuse across layers & steps."""
    n = adj_t.shape[0]
    assert adj_t.shape == (n, n), "adjacency must be square (N, N)"
    assert tm % 32 == 0 and tk % 128 == 0, "tm must be a multiple of 32, tk of 128"

    # Clamp tiles for small graphs (keeps padding waste < one tile per axis).
    n128 = _round_up(n, 128)
    tm = min(tm, n128)
    tk = min(tk, n128)

    # Degree / norm from the ORIGINAL adjacency values (PyTorch: adj_t.sum(-1)).
    deg = jnp.sum(adj_t.astype(jnp.float32), axis=-1)
    norm = jax.lax.rsqrt(1.0 + deg).reshape(-1, 1)                 # (N, 1) f32

    # Residual folded into the diagonal: (adj + I) @ xn == adj @ xn + xn.
    adj_i8 = adj_t.astype(jnp.int8) + jnp.eye(n, dtype=jnp.int8)

    np_rows = _round_up(n, tm)      # per-axis padding (no lcm blow-up)
    np_cols = _round_up(n, tk)
    adj_p = jnp.pad(adj_i8, ((0, np_rows - n), (0, np_cols - n)))
    norm_p = jnp.pad(norm, ((0, np_rows - n), (0, 0)))

    return PreparedGCNAdj(adj=adj_p, norm=norm_p, n=n, tm=tm, tk=tk)


def _make_gcn_kernel(*, xnb_resident: bool, tk: int, acc_in_out: bool):
    def kernel(adj_ref, xnb_ref, norm_ref, o_ref, *scratch):
        # adj_ref : (tm, tk) int8        -- (adj + I) tile, block (i, k)
        # xnb_ref : (np_cols, dp) bf16   -- resident, or (tk, dp) bf16 block (k, 0)
        # norm_ref: (tm, 1)  f32         -- rsqrt(1 + deg) for this row tile
        # o_ref   : (tm, dp) out dtype   -- doubles as the accumulator if f32
        acc_ref = o_ref if acc_in_out else scratch[0]
        k = pl.program_id(1)

        @pl.when(k == 0)
        def _():
            acc_ref[...] = jnp.zeros_like(acc_ref)

        # int8 (0/1/2) -> bf16 is exact; the VPU cast hides under the adj DMA.
        adj = adj_ref[...].astype(jnp.bfloat16)
        if xnb_resident:
            off = pl.multiple_of(k * tk, tk)
            xnb = xnb_ref[pl.ds(off, tk), :]
        else:
            xnb = xnb_ref[...]

        # MXU: bf16 x bf16 -> f32 accumulate.
        acc_ref[...] += jnp.dot(adj, xnb, preferred_element_type=jnp.float32)

        @pl.when(k == pl.num_programs(1) - 1)
        def _():
            # (adj + I) @ xn already contains the residual; just scale by norm.
            o_ref[...] = (norm_ref[...] * acc_ref[...]).astype(o_ref.dtype)

    return kernel


def pure_conv_gcn_prepared(x, prep: PreparedGCNAdj, *, xnb_resident=None):
    n, d = x.shape
    assert n == prep.n
    tm, tk = prep.tm, prep.tk
    np_rows, np_cols = prep.adj.shape
    dp = _round_up(d, 128)                       # lane-dense feature dim
    out_dtype = x.dtype

    # ---- cheap x-dependent prologue: xn = norm * x, bf16 MXU operand --------
    xn = prep.norm[:n] * x.astype(jnp.float32)
    xnb_p = jnp.pad(xn.astype(jnp.bfloat16), ((0, np_cols - n), (0, dp - d)))

    if xnb_resident is None:
        # Whole pre-scaled feature matrix VMEM-resident when small: one DMA
        # total instead of one per row tile.
        xnb_resident = np_cols * dp * 2 <= 4 * 1024 * 1024

    acc_in_out = out_dtype == jnp.float32        # accumulate directly into o_ref

    # ---- VMEM budget (double-buffered blocks + accumulator) -----------------
    out_bytes = jnp.dtype(out_dtype).itemsize
    est = (
        2 * tm * tk * 1                                              # adj int8
        + (np_cols * dp * 2 if xnb_resident else 2 * tk * dp * 2)    # xnb bf16
        + 2 * tm * 128 * 4                                           # norm (lane pad)
        + 2 * tm * dp * out_bytes                                    # out block
        + (0 if acc_in_out else tm * dp * 4)                         # f32 scratch
    )
    assert est <= 44 * 1024 * 1024, (
        "tile config exceeds v7x VMEM budget; reduce tm/tk or feature width"
    )
    vmem_limit = int(min(max(est * 3 // 2 + (4 << 20), 32 << 20), 48 << 20))

    grid = (np_rows // tm, np_cols // tk)

    xnb_spec = (
        pl.BlockSpec((np_cols, dp), lambda i, k: (0, 0))   # resident, DMA'd once
        if xnb_resident
        else pl.BlockSpec((tk, dp), lambda i, k: (k, 0))   # blocked along k
    )
    kernel = _make_gcn_kernel(xnb_resident=xnb_resident, tk=tk, acc_in_out=acc_in_out)

    out = pl.pallas_call(
        kernel,
        out_shape=jax.ShapeDtypeStruct((np_rows, dp), out_dtype),
        grid_spec=pltpu.PrefetchScalarGridSpec(
            num_scalar_prefetch=0,
            grid=grid,
            in_specs=[
                pl.BlockSpec((tm, tk), lambda i, k: (i, k)),   # (adj + I) tile, int8
                xnb_spec,                                      # pre-scaled features
                pl.BlockSpec((tm, 1), lambda i, k: (i, 0)),    # norm rows, f32
            ],
            out_specs=pl.BlockSpec((tm, dp), lambda i, k: (i, 0)),
            scratch_shapes=(
                [] if acc_in_out else [pltpu.VMEM((tm, dp), jnp.float32)]
            ),
        ),
        compiler_params=pltpu.CompilerParams(
            dimension_semantics=("parallel", "arbitrary"),
            vmem_limit_bytes=vmem_limit,
        ),
    )(prep.adj, xnb_p, prep.norm)

    return out[:n, :d]


def pure_conv_gcn(x, adj_t, *, tm=512, tk=1024, xnb_resident=None):
    """PureConv(indim, outdim=indim, aggr='gcn').forward(x, adj_t), dense adj."""
    prep = prepare_gcn_adj(adj_t, tm=tm, tk=tk)
    return pure_conv_gcn_prepared(x, prep, xnb_resident=xnb_resident)


# ---------------------------- references ------------------------------------
def _reference_f32(x, adj_t):
    """Pure float32 reference (module semantics)."""
    a32 = adj_t.astype(jnp.float32)
    x32 = x.astype(jnp.float32)
    norm = jax.lax.rsqrt(1.0 + jnp.sum(a32, axis=-1)).reshape(-1, 1)
    xn = norm * x32
    y = a32 @ xn + xn
    return (norm * y).astype(x.dtype)


def _reference_bf16_operand(x, adj_t):
    """Mirrors kernel numerics: (adj + I) exact, xn rounded to bf16, f32 acc."""
    n = adj_t.shape[0]
    a32 = adj_t.astype(jnp.float32) + jnp.eye(n, dtype=jnp.float32)
    x32 = x.astype(jnp.float32)
    norm = jax.lax.rsqrt(
        1.0 + jnp.sum(adj_t.astype(jnp.float32), axis=-1)
    ).reshape(-1, 1)
    xn_b = (norm * x32).astype(jnp.bfloat16).astype(jnp.float32)
    y = a32 @ xn_b
    return (norm * y).astype(x.dtype)


if __name__ == "__main__":
    key = jax.random.PRNGKey(0)
    k_adj, k_x = jax.random.split(key)

    # Small graph with non-(8,128)-aligned sizes to exercise per-axis padding.
    N, D = 200, 48
    adj_t = (jax.random.uniform(k_adj, (N, N)) < 0.05).astype(jnp.float32)
    x = jax.random.normal(k_x, (N, D), dtype=jnp.float32)

    ref_b = _reference_bf16_operand(x, adj_t)
    ref32 = _reference_f32(x, adj_t)

    # 1) default tiles, resident xnb, f32 accumulate-in-output path.
    out1 = jax.block_until_ready(pure_conv_gcn(x, adj_t))
    assert out1.shape == (N, D) and out1.dtype == x.dtype
    assert jnp.allclose(out1, ref_b, atol=1e-3, rtol=1e-3), "mismatch (resident path)"
    assert jnp.allclose(out1, ref32, atol=5e-2, rtol=5e-2), "mismatch vs f32 reference"

    # 2) small tiles, forced k-blocked xnb, multi-tile grid with k-accumulation.
    out2 = jax.block_until_ready(
        pure_conv_gcn(x, adj_t, tm=128, tk=128, xnb_resident=False)
    )
    assert jnp.allclose(out2, ref_b, atol=1e-3, rtol=1e-3), "mismatch (blocked path)"

    # 3) bf16 features -> f32 scratch-accumulator path, bf16 output.
    x16 = x.astype(jnp.bfloat16)
    out3 = jax.block_until_ready(pure_conv_gcn(x16, adj_t))
    assert out3.dtype == jnp.bfloat16
    ref16 = _reference_bf16_operand(x16, adj_t)
    assert jnp.allclose(
        out3.astype(jnp.float32), ref16.astype(jnp.float32), atol=3e-2, rtol=3e-2
    ), "mismatch (bf16 output path)"

    print("KERNEL_OK")
</pallas_src>

<mosaic_0001>
module attributes {stable_mosaic.version = 11 : i64} {
  func.func @kernel(%arg0: i32, %arg1: i32, %arg2: memref<256x256xi8, #tpu.memory_space<vmem>>, %arg3: memref<256x128xbf16, #tpu.memory_space<vmem>>, %arg4: memref<256x1xf32, #tpu.memory_space<vmem>>, %arg5: memref<256x128xf32, #tpu.memory_space<vmem>>) attributes {dimension_semantics = [#tpu.dimension_semantics<parallel>, #tpu.dimension_semantics<arbitrary>], iteration_bounds = array<i64: 1, 1>, scalar_prefetch = 0 : i64, scratch_operands = 0 : i64, tpu.core_type = #tpu.core_type<tc>, window_params = [{transform_indices = @transform_0, window_bounds = array<i64: 256, 256>}, {pipeline_mode = #tpu.pipeline_mode<synchronous>, transform_indices = @transform_1, window_bounds = array<i64: 256, 128>}, {transform_indices = @transform_2, window_bounds = array<i64: 256, 1>}, {transform_indices = @transform_3, window_bounds = array<i64: 256, 128>}]} {
    %c0_i32 = arith.constant 0 : i32
    %0 = arith.cmpi eq, %arg1, %c0_i32 : i32
    %1 = arith.extui %0 : i1 to i32
    %c0_i32_0 = arith.constant 0 : i32
    %2 = arith.cmpi ne, %1, %c0_i32_0 : i32
    scf.if %2 {
      %cst_9 = arith.constant 0.000000e+00 : f32
      %16 = vector.broadcast %cst_9 : f32 to vector<256x128xf32>
      %c0_10 = arith.constant 0 : index
      %c0_11 = arith.constant 0 : index
      %17 = vector.load %arg5[%c0_10, %c0_11] : memref<256x128xf32, #tpu.memory_space<vmem>>, vector<256x128xf32>
      tpu.vector_store %arg5[%c0_10, %c0_11], %16 {strides = array<i32>} : memref<256x128xf32, #tpu.memory_space<vmem>>, vector<256x128xf32>,
    } else {
    }
    %c0 = arith.constant 0 : index
    %c0_1 = arith.constant 0 : index
    %3 = vector.load %arg2[%c0, %c0_1] : memref<256x256xi8, #tpu.memory_space<vmem>>, vector<256x256xi8>
    %4 = arith.sitofp %3 : vector<256x256xi8> to vector<256x256xbf16>
    %c256_i32 = arith.constant 256 : i32
    %5 = arith.muli %arg1, %c256_i32 : i32
    %6 = tpu.assume_multiple %5, 256 : i32
    %7 = arith.index_cast %6 : i32 to index
    %c0_2 = arith.constant 0 : index
    %8 = vector.load %arg3[%7, %c0_2] : memref<256x128xbf16, #tpu.memory_space<vmem>>, vector<256x128xbf16>
    %c0_3 = arith.constant 0 : index
    %c0_4 = arith.constant 0 : index
    %9 = vector.load %arg5[%c0_3, %c0_4] : memref<256x128xf32, #tpu.memory_space<vmem>>, vector<256x128xf32>
    %cst = arith.constant dense<0.000000e+00> : vector<256x128xf32>
    %10 = tpu.matmul %4, %8, %cst {dimension_numbers = #tpu.dot_dimension_numbers<[1], [0], [0], [1], [0, 0, 1, 1], [], []>} : vector<256x256xbf16>, vector<256x128xbf16>, vector<256x128xf32> -> vector<256x128xf32>
    %11 = arith.addf %9, %10 : vector<256x128xf32>
    %c0_5 = arith.constant 0 : index
    %c0_6 = arith.constant 0 : index
    %12 = vector.load %arg5[%c0_5, %c0_6] : memref<256x128xf32, #tpu.memory_space<vmem>>, vector<256x128xf32>
    tpu.vector_store %arg5[%c0_5, %c0_6], %11 {strides = array<i32>} : memref<256x128xf32, #tpu.memory_space<vmem>>, vector<256x128xf32>,
    %c0_i32_7 = arith.constant 0 : i32
    %13 = arith.cmpi eq, %arg1, %c0_i32_7 : i32
    %14 = arith.extui %13 : i1 to i32
    %c0_i32_8 = arith.constant 0 : i32
    %15 = arith.cmpi ne, %14, %c0_i32_8 : i32
    scf.if %15 {
      %c0_9 = arith.constant 0 : index
      %c0_10 = arith.constant 0 : index
      %16 = vector.load %arg4[%c0_9, %c0_10] : memref<256x1xf32, #tpu.memory_space<vmem>>, vector<256x1xf32>
      %c0_11 = arith.constant 0 : index
      %c0_12 = arith.constant 0 : index
      %17 = vector.load %arg5[%c0_11, %c0_12] : memref<256x128xf32, #tpu.memory_space<vmem>>, vector<256x128xf32>
      %18 = vector.broadcast %16 : vector<256x1xf32> to vector<256x128xf32>
      %19 = arith.mulf %18, %17 : vector<256x128xf32>
      %c0_13 = arith.constant 0 : index
      %c0_14 = arith.constant 0 : index
      %20 = vector.load %arg5[%c0_13, %c0_14] : memref<256x128xf32, #tpu.memory_space<vmem>>, vector<256x128xf32>
      tpu.vector_store %arg5[%c0_13, %c0_14], %19 {strides = array<i32>} : memref<256x128xf32, #tpu.memory_space<vmem>>, vector<256x128xf32>,
    } else {
    }
    return
  }
  func.func @transform_0(%arg0: i32, %arg1: i32) -> (i32, i32) {
    %c0_i32 = arith.constant 0 : i32
    return %arg0, %arg1 : i32, i32
  }
  func.func @transform_1(%arg0: i32, %arg1: i32) -> (i32, i32) {
    %c0_i32 = arith.constant 0 : i32
    %c0_i32_0 = arith.constant 0 : i32
    %c0_i32_1 = arith.constant 0 : i32
    return %c0_i32, %c0_i32_0 : i32, i32
  }
  func.func @transform_2(%arg0: i32, %arg1: i32) -> (i32, i32) {
    %c0_i32 = arith.constant 0 : i32
    %c0_i32_0 = arith.constant 0 : i32
    return %arg0, %c0_i32 : i32, i32
  }
  func.func @transform_3(%arg0: i32, %arg1: i32) -> (i32, i32) {
    %c0_i32 = arith.constant 0 : i32
    %c0_i32_0 = arith.constant 0 : i32
    return %arg0, %c0_i32 : i32, i32
  }
}

</mosaic_0001>

<llo_original>
// kernel: tpu_custom_call.1
$region0: #{tpu_custom_call.1}
  #allocation0 [shape = 'u32[]', space=smem, size = 0x4, offset = 0x4, fixed_abs, tag = 'smem constant byte address 0x4 - core index']
  #allocation1 [shape = 'u32[144,128]{1,0:T(1,128)}', space=vmem, size = 0x12000, scoped, tag = 'internal scratch']
  %s0 = inlined_call_operand.vmem [shape: s8[256,256], index: 0, kind: input, shape index: {}]
  %s1 = inlined_call_operand.vmem [shape: bf16[256,128], index: 1, kind: input, shape index: {}]
  %s2 = inlined_call_operand.vmem [shape: f32[256,1], index: 2, kind: input, shape index: {}]
  %s3 = inlined_call_operand.hbm [shape: f32[256,128], index: 3, kind: output, shape index: {}]
  %s4 = sld [smem:[#allocation0]]
  $region30: #{tpu_custom_call.1} parent=0
    _
  %s6 = ssub.s32 1, %s4
  %s7 = scalar_select 0, %s6, %s4
  $region1: #{tpu_custom_call.1} parent=0
    #allocation2 [shape = 'u8[131072]{0}', space=vmem, size = 0x20000, scoped, tag = 'output window, operand 0, single buffered']
    #allocation3 [shape = 's32[1]{0}', space=sflag, size = 0x4, scoped, tag = 'scoped memory for tpu_custom_call.1']
    %8 = vsyncpa [#allocation3], 0
    // Predicated region
    $region2: #{tpu_custom_call.1} parent=1 // pred_check
      _
    $region3: #{tpu_custom_call.1} parent=1 // pred_check_branch
      %10 = sbr.rel (0) target = $region5
    $region4: #{tpu_custom_call.1} parent=1 // pred_region
      _
    $region5: #{tpu_custom_call.1} parent=1 // pred_fallthru
      _
    // Predicated region
    $region6: #{tpu_custom_call.1} parent=1 // pred_check
      _
    $region7: #{tpu_custom_call.1} parent=1 // pred_check_branch
      %12 = sbr.rel (0) target = $region9
    $region8: #{tpu_custom_call.1} parent=1 // pred_region
      _
    $region9: #{tpu_custom_call.1} parent=1 // pred_fallthru
      _
    // Predicated region
    $region10: #{tpu_custom_call.1} parent=1 // pred_check
      _
    $region11: #{tpu_custom_call.1} parent=1 // pred_check_branch
      %14 = sbr.rel (0) target = $region13
    $region12: #{tpu_custom_call.1} parent=1 // pred_region
      _
    $region13: #{tpu_custom_call.1} parent=1 // pred_fallthru
      _
    %p16 = scmp.eq.s32.totalorder 0, 0
    // Predicated region
    $region14: #{tpu_custom_call.1} parent=1 // pred_check
      %p17 = pneg %p16
    $region15: #{tpu_custom_call.1} parent=1 // pred_check_branch
      %19 = sbr.rel (%p17) target = $region17
    $region16: #{tpu_custom_call.1} parent=1 // pred_region
      %20 = vst [vmem:[#allocation2] sm:$0xff] 0.0
      %21 = vst [vmem:[#allocation2 + $0x8] sm:$0xff] 0.0
      %22 = vst [vmem:[#allocation2 + $0x10] sm:$0xff] 0.0
      %23 = vst [vmem:[#allocation2 + $0x18] sm:$0xff] 0.0
      %24 = vst [vmem:[#allocation2 + $0x20] sm:$0xff] 0.0
      %25 = vst [vmem:[#allocation2 + $0x28] sm:$0xff] 0.0
      %26 = vst [vmem:[#allocation2 + $0x30] sm:$0xff] 0.0
      %27 = vst [vmem:[#allocation2 + $0x38] sm:$0xff] 0.0
      %28 = vst [vmem:[#allocation2 + $0x40] sm:$0xff] 0.0
      %29 = vst [vmem:[#allocation2 + $0x48] sm:$0xff] 0.0
      %30 = vst [vmem:[#allocation2 + $0x50] sm:$0xff] 0.0
      %31 = vst [vmem:[#allocation2 + $0x58] sm:$0xff] 0.0
      %32 = vst [vmem:[#allocation2 + $0x60] sm:$0xff] 0.0
      %33 = vst [vmem:[#allocation2 + $0x68] sm:$0xff] 0.0
      %34 = vst [vmem:[#allocation2 + $0x70] sm:$0xff] 0.0
      %35 = vst [vmem:[#allocation2 + $0x78] sm:$0xff] 0.0
      %36 = vst [vmem:[#allocation2 + $0x80] sm:$0xff] 0.0
      %37 = vst [vmem:[#allocation2 + $0x88] sm:$0xff] 0.0
      %38 = vst [vmem:[#allocation2 + $0x90] sm:$0xff] 0.0
      %39 = vst [vmem:[#allocation2 + $0x98] sm:$0xff] 0.0
      %40 = vst [vmem:[#allocation2 + $0xa0] sm:$0xff] 0.0
      %41 = vst [vmem:[#allocation2 + $0xa8] sm:$0xff] 0.0
      %42 = vst [vmem:[#allocation2 + $0xb0] sm:$0xff] 0.0
      %43 = vst [vmem:[#allocation2 + $0xb8] sm:$0xff] 0.0
      %44 = vst [vmem:[#allocation2 + $0xc0] sm:$0xff] 0.0
      %45 = vst [vmem:[#allocation2 + $0xc8] sm:$0xff] 0.0
      %46 = vst [vmem:[#allocation2 + $0xd0] sm:$0xff] 0.0
      %47 = vst [vmem:[#allocation2 + $0xd8] sm:$0xff] 0.0
      %48 = vst [vmem:[#allocation2 + $0xe0] sm:$0xff] 0.0
      %49 = vst [vmem:[#allocation2 + $0xe8] sm:$0xff] 0.0
      %50 = vst [vmem:[#allocation2 + $0xf0] sm:$0xff] 0.0
      %51 = vst [vmem:[#allocation2 + $0xf8] sm:$0xff] 0.0
    $region17: #{tpu_custom_call.1} parent=1 // pred_fallthru
      _
    %v52 = vld [vmem:[%s0] sm:$0xff]
    %v53 = vld [vmem:[%s0 + $0x8] sm:$0xff]
    %v54 = vld [vmem:[%s0 + $0x10] sm:$0xff]
    %v55 = vld [vmem:[%s0 + $0x18] sm:$0xff]
    %v56 = vld [vmem:[%s0 + $0x20] sm:$0xff]
    %v57 = vld [vmem:[%s0 + $0x28] sm:$0xff]
    %v58 = vld [vmem:[%s0 + $0x30] sm:$0xff]
    %v59 = vld [vmem:[%s0 + $0x38] sm:$0xff]
    %v60 = vld [vmem:[%s0 + $0x40] sm:$0xff]
    %v61 = vld [vmem:[%s0 + $0x48] sm:$0xff]
    %v62 = vld [vmem:[%s0 + $0x50] sm:$0xff]
    %v63 = vld [vmem:[%s0 + $0x58] sm:$0xff]
    %v64 = vld [vmem:[%s0 + $0x60] sm:$0xff]
    %v65 = vld [vmem:[%s0 + $0x68] sm:$0xff]
    %v66 = vld [vmem:[%s0 + $0x70] sm:$0xff]
    %v67 = vld [vmem:[%s0 + $0x78] sm:$0xff]
    %v68 = vunpack.c.l.s8.bf16 %v52
    %v69 = vunpack.c.l.s8.bf16 %v53
    %v70 = vunpack.c.h.s8.bf16 %v52
    %v71 = vunpack.c.h.s8.bf16 %v53
    %v72 = vunpack.c.l.s8.bf16 %v54
    %v73 = vunpack.c.l.s8.bf16 %v55
    %v74 = vunpack.c.h.s8.bf16 %v54
    %v75 = vunpack.c.h.s8.bf16 %v55
    %v76 = vunpack.c.l.s8.bf16 %v56
    %v77 = vunpack.c.l.s8.bf16 %v57
    %v78 = vunpack.c.h.s8.bf16 %v56
    %v79 = vunpack.c.h.s8.bf16 %v57
    %v80 = vunpack.c.l.s8.bf16 %v58
    %v81 = vunpack.c.l.s8.bf16 %v59
    %v82 = vunpack.c.h.s8.bf16 %v58
    %v83 = vunpack.c.h.s8.bf16 %v59
    %v84 = vunpack.c.l.s8.bf16 %v60
    %v85 = vunpack.c.l.s8.bf16 %v61
    %v86 = vunpack.c.h.s8.bf16 %v60
    %v87 = vunpack.c.h.s8.bf16 %v61
    %v88 = vunpack.c.l.s8.bf16 %v62
    %v89 = vunpack.c.l.s8.bf16 %v63
    %v90 = vunpack.c.h.s8.bf16 %v62
    %v91 = vunpack.c.h.s8.bf16 %v63
    %v92 = vunpack.c.l.s8.bf16 %v64
    %v93 = vunpack.c.l.s8.bf16 %v65
    %v94 = vunpack.c.h.s8.bf16 %v64
    %v95 = vunpack.c.h.s8.bf16 %v65
    %v96 = vunpack.c.l.s8.bf16 %v66
    %v97 = vunpack.c.l.s8.bf16 %v67
    %v98 = vunpack.c.h.s8.bf16 %v66
    %v99 = vunpack.c.h.s8.bf16 %v67
    %s100 = smul.u32 0, 256
    %s101 = sshra.s32 %s100, 3
    %s102 = sand.u32 %s100, 7
    %s103 = smul.addr %s101, 4
    %s104 = scalar_lea.vmem %s1, %s103
    %v105 = vld [vmem:[%s104] sm:$0xf]
    %v106 = vld [vmem:[%s104 + $0x4] sm:$0xf]
    %v107 = vld [vmem:[%s104 + $0x8] sm:$0xf]
    %v108 = vld [vmem:[%s104 + $0xc] sm:$0xf]
    %v109 = vld [vmem:[%s104 + $0x10] sm:$0xf]
    %v110 = vld [vmem:[%s104 + $0x14] sm:$0xf]
    %v111 = vld [vmem:[%s104 + $0x18] sm:$0xf]
    %v112 = vld [vmem:[%s104 + $0x1c] sm:$0xf]
    %v113 = vld [vmem:[%s104 + $0x20] sm:$0xf]
    %v114 = vld [vmem:[%s104 + $0x24] sm:$0xf]
    %v115 = vld [vmem:[%s104 + $0x28] sm:$0xf]
    %v116 = vld [vmem:[%s104 + $0x2c] sm:$0xf]
    %v117 = vld [vmem:[%s104 + $0x30] sm:$0xf]
    %v118 = vld [vmem:[%s104 + $0x34] sm:$0xf]
    %v119 = vld [vmem:[%s104 + $0x38] sm:$0xf]
    %v120 = vld [vmem:[%s104 + $0x3c] sm:$0xf]
    %v121 = vld [vmem:[%s104 + $0x40] sm:$0xf]
    %v122 = vld [vmem:[%s104 + $0x44] sm:$0xf]
    %v123 = vld [vmem:[%s104 + $0x48] sm:$0xf]
    %v124 = vld [vmem:[%s104 + $0x4c] sm:$0xf]
    %v125 = vld [vmem:[%s104 + $0x50] sm:$0xf]
    %v126 = vld [vmem:[%s104 + $0x54] sm:$0xf]
    %v127 = vld [vmem:[%s104 + $0x58] sm:$0xf]
    %v128 = vld [vmem:[%s104 + $0x5c] sm:$0xf]
    %v129 = vld [vmem:[%s104 + $0x60] sm:$0xf]
    %v130 = vld [vmem:[%s104 + $0x64] sm:$0xf]
    %v131 = vld [vmem:[%s104 + $0x68] sm:$0xf]
    %v132 = vld [vmem:[%s104 + $0x6c] sm:$0xf]
    %v133 = vld [vmem:[%s104 + $0x70] sm:$0xf]
    %v134 = vld [vmem:[%s104 + $0x74] sm:$0xf]
    %v135 = vld [vmem:[%s104 + $0x78] sm:$0xf]
    %v136 = vld [vmem:[%s104 + $0x7c] sm:$0xf]
    %v137 = vld [vmem:[#allocation2] sm:$0xff]
    %v138 = vld [vmem:[#allocation2 + $0x8] sm:$0xff]
    %v139 = vld [vmem:[#allocation2 + $0x10] sm:$0xff]
    %v140 = vld [vmem:[#allocation2 + $0x18] sm:$0xff]
    %v141 = vld [vmem:[#allocation2 + $0x20] sm:$0xff]
    %v142 = vld [vmem:[#allocation2 + $0x28] sm:$0xff]
    %v143 = vld [vmem:[#allocation2 + $0x30] sm:$0xff]
    %v144 = vld [vmem:[#allocation2 + $0x38] sm:$0xff]
    %v145 = vld [vmem:[#allocation2 + $0x40] sm:$0xff]
    %v146 = vld [vmem:[#allocation2 + $0x48] sm:$0xff]
    %v147 = vld [vmem:[#allocation2 + $0x50] sm:$0xff]
    %v148 = vld [vmem:[#allocation2 + $0x58] sm:$0xff]
    %v149 = vld [vmem:[#allocation2 + $0x60] sm:$0xff]
    %v150 = vld [vmem:[#allocation2 + $0x68] sm:$0xff]
    %v151 = vld [vmem:[#allocation2 + $0x70] sm:$0xff]
    %v152 = vld [vmem:[#allocation2 + $0x78] sm:$0xff]
    %v153 = vld [vmem:[#allocation2 + $0x80] sm:$0xff]
    %v154 = vld [vmem:[#allocation2 + $0x88] sm:$0xff]
    %v155 = vld [vmem:[#allocation2 + $0x90] sm:$0xff]
    %v156 = vld [vmem:[#allocation2 + $0x98] sm:$0xff]
    %v157 = vld [vmem:[#allocation2 + $0xa0] sm:$0xff]
    %v158 = vld [vmem:[#allocation2 + $0xa8] sm:$0xff]
    %v159 = vld [vmem:[#allocation2 + $0xb0] sm:$0xff]
    %v160 = vld [vmem:[#allocation2 + $0xb8] sm:$0xff]
    %v161 = vld [vmem:[#allocation2 + $0xc0] sm:$0xff]
    %v162 = vld [vmem:[#allocation2 + $0xc8] sm:$0xff]
    %v163 = vld [vmem:[#allocation2 + $0xd0] sm:$0xff]
    %v164 = vld [vmem:[#allocation2 + $0xd8] sm:$0xff]
    %v165 = vld [vmem:[#allocation2 + $0xe0] sm:$0xff]
    %v166 = vld [vmem:[#allocation2 + $0xe8] sm:$0xff]
    %v167 = vld [vmem:[#allocation2 + $0xf0] sm:$0xff]
    %v168 = vld [vmem:[#allocation2 + $0xf8] sm:$0xff]
    %v201 = vunpack.c.l.b16 %v105
    %v202 = vunpack.c.l.b16 %v106
    %v203 = vunpack.c.l.b16 %v107
    %v204 = vunpack.c.l.b16 %v108
    %v205 = vunpack.c.l.b16 %v109
    %v206 = vunpack.c.l.b16 %v110
    %v207 = vunpack.c.l.b16 %v111
    %v208 = vunpack.c.l.b16 %v112
    %v209 = vunpack.c.l.b16 %v113
    %v210 = vunpack.c.l.b16 %v114
    %v211 = vunpack.c.l.b16 %v115
    %v212 = vunpack.c.l.b16 %v116
    %v213 = vunpack.c.l.b16 %v117
    %v214 = vunpack.c.l.b16 %v118
    %v215 = vunpack.c.l.b16 %v119
    %v216 = vunpack.c.l.b16 %v120
    %v217 = vunpack.c.l.b16 %v121
    %v218 = vunpack.c.l.b16 %v122
    %v219 = vunpack.c.l.b16 %v123
    %v220 = vunpack.c.l.b16 %v124
    %v221 = vunpack.c.l.b16 %v125
    %v222 = vunpack.c.l.b16 %v126
    %v223 = vunpack.c.l.b16 %v127
    %v224 = vunpack.c.l.b16 %v128
    %v225 = vunpack.c.l.b16 %v129
    %v226 = vunpack.c.l.b16 %v130
    %v227 = vunpack.c.l.b16 %v131
    %v228 = vunpack.c.l.b16 %v132
    %v229 = vunpack.c.l.b16 %v133
    %v230 = vunpack.c.l.b16 %v134
    %v231 = vunpack.c.l.b16 %v135
    %v232 = vunpack.c.l.b16 %v136
    %v233 = vpack.c.b16 %v202, %v201
    %v234 = vpack.c.b16 %v204, %v203
    %v235 = vpack.c.b16 %v206, %v205
    %v236 = vpack.c.b16 %v208, %v207
    %v237 = vpack.c.b16 %v210, %v209
    %v238 = vpack.c.b16 %v212, %v211
    %v239 = vpack.c.b16 %v214, %v213
    %v240 = vpack.c.b16 %v216, %v215
    %v241 = vpack.c.b16 %v218, %v217
    %v242 = vpack.c.b16 %v220, %v219
    %v243 = vpack.c.b16 %v222, %v221
    %v244 = vpack.c.b16 %v224, %v223
    %v245 = vpack.c.b16 %v226, %v225
    %v246 = vpack.c.b16 %v228, %v227
    %v247 = vpack.c.b16 %v230, %v229
    %v248 = vpack.c.b16 %v232, %v231
    %265 = vmatprep.subr.bf16.mxu0 0
    %266 = vmatpush1.bf16.msra.mxu0 %v240
    %267 = vmatprep.subr.bf16.mxu0 0
    %268 = vmatpush1.bf16.msra.mxu0 %v239
    %269 = vmatprep.subr.bf16.mxu0 0
    %270 = vmatpush1.bf16.msra.mxu0 %v238
    %271 = vmatprep.subr.bf16.mxu0 0
    %272 = vmatpush1.bf16.msra.mxu0 %v237
    %273 = vmatprep.subr.bf16.mxu0 0
    %274 = vmatpush1.bf16.msra.mxu0 %v236
    %275 = vmatprep.subr.bf16.mxu0 0
    %276 = vmatpush1.bf16.msra.mxu0 %v235
    %277 = vmatprep.subr.bf16.mxu0 0
    %278 = vmatpush1.bf16.msra.mxu0 %v234
    %279 = vmatprep.subr.bf16.mxu0 0
    %280 = vmatpush1.bf16.msra.mxu0 %v233
    %281 = vmatprep.subr.bf16.mxu0 0
    %282 = vmatpush2.bf16.msra.mxu0 %v248
    %283 = vmatprep.subr.bf16.mxu0 0
    %284 = vmatpush2.bf16.msra.mxu0 %v247
    %285 = vmatprep.subr.bf16.mxu0 0
    %286 = vmatpush2.bf16.msra.mxu0 %v246
    %287 = vmatprep.subr.bf16.mxu0 0
    %288 = vmatpush2.bf16.msra.mxu0 %v245
    %289 = vmatprep.subr.bf16.mxu0 0
    %290 = vmatpush2.bf16.msra.mxu0 %v244
    %291 = vmatprep.subr.bf16.mxu0 0
    %292 = vmatpush2.bf16.msra.mxu0 %v243
    %293 = vmatprep.subr.bf16.mxu0 0
    %294 = vmatpush2.bf16.msra.mxu0 %v242
    %295 = vmatprep.subr.bf16.mxu0 0
    %296 = vmatpush2.bf16.msra.mxu0 %v241
    %297 = vmatprep.mubr.bf16.mxu0 %v69
    %298 = vmatmul.mubr.bf16.gmra.mxu0 %v68
    %v299 = vpop.f32.mrf.mxu0
    %v300 = vadd.f32 0.0, %v299
    %v301 = vpop.f32.mrf.mxu0
    %v302 = vpop.f32.mrf.mxu0
    %v303 = vadd.f32 0.0, %v302
    %v304 = vpop.f32.mrf.mxu0
    %305 = vmatprep.mubr.bf16.mxu0 %v71
    %306 = vmatmul.mubr.bf16.gmra.mxu0 %v70
    %v307 = vpop.f32.mrf.mxu0
    %v308 = vadd.f32 0.0, %v307
    %v309 = vpop.f32.mrf.mxu0
    %v310 = vpop.f32.mrf.mxu0
    %v311 = vadd.f32 0.0, %v310
    %v312 = vpop.f32.mrf.mxu0
    %313 = vmatprep.mubr.bf16.mxu0 %v73
    %314 = vmatmul.mubr.bf16.gmra.mxu0 %v72
    %v315 = vpop.f32.mrf.mxu0
    %v316 = vadd.f32 0.0, %v315
    %v317 = vpop.f32.mrf.mxu0
    %v318 = vpop.f32.mrf.mxu0
    %v319 = vadd.f32 0.0, %v318
    %v320 = vpop.f32.mrf.mxu0
    %321 = vmatprep.mubr.bf16.mxu0 %v75
    %322 = vmatmul.mubr.bf16.gmra.mxu0 %v74
    %v323 = vpop.f32.mrf.mxu0
    %v324 = vadd.f32 0.0, %v323
    %v325 = vpop.f32.mrf.mxu0
    %v326 = vpop.f32.mrf.mxu0
    %v327 = vadd.f32 0.0, %v326
    %v328 = vpop.f32.mrf.mxu0
    %329 = vmatprep.mubr.bf16.mxu0 %v77
    %330 = vmatmul.mubr.bf16.gmra.mxu0 %v76
    %v331 = vpop.f32.mrf.mxu0
    %v332 = vadd.f32 0.0, %v331
    %v333 = vpop.f32.mrf.mxu0
    %v334 = vpop.f32.mrf.mxu0
    %v335 = vadd.f32 0.0, %v334
    %v336 = vpop.f32.mrf.mxu0
    %337 = vmatprep.mubr.bf16.mxu0 %v79
    %338 = vmatmul.mubr.bf16.gmra.mxu0 %v78
    %v339 = vpop.f32.mrf.mxu0
    %v340 = vadd.f32 0.0, %v339
    %v341 = vpop.f32.mrf.mxu0
    %v342 = vpop.f32.mrf.mxu0
    %v343 = vadd.f32 0.0, %v342
    %v344 = vpop.f32.mrf.mxu0
    %345 = vmatprep.mubr.bf16.mxu0 %v81
    %346 = vmatmul.mubr.bf16.gmra.mxu0 %v80
    %v347 = vpop.f32.mrf.mxu0
    %v348 = vadd.f32 0.0, %v347
    %v349 = vpop.f32.mrf.mxu0
    %v350 = vpop.f32.mrf.mxu0
    %v351 = vadd.f32 0.0, %v350
    %v352 = vpop.f32.mrf.mxu0
    %353 = vmatprep.mubr.bf16.mxu0 %v83
    %354 = vmatmul.mubr.bf16.gmra.mxu0 %v82
    %v355 = vpop.f32.mrf.mxu0
    %v356 = vadd.f32 0.0, %v355
    %v357 = vpop.f32.mrf.mxu0
    %v358 = vpop.f32.mrf.mxu0
    %v359 = vadd.f32 0.0, %v358
    %v360 = vpop.f32.mrf.mxu0
    %361 = vmatprep.mubr.bf16.mxu0 %v85
    %362 = vmatmul.mubr.bf16.gmra.mxu0 %v84
    %v363 = vpop.f32.mrf.mxu0
    %v364 = vadd.f32 0.0, %v363
    %v365 = vpop.f32.mrf.mxu0
    %v366 = vpop.f32.mrf.mxu0
    %v367 = vadd.f32 0.0, %v366
    %v368 = vpop.f32.mrf.mxu0
    %369 = vmatprep.mubr.bf16.mxu0 %v87
    %370 = vmatmul.mubr.bf16.gmra.mxu0 %v86
    %v371 = vpop.f32.mrf.mxu0
    %v372 = vadd.f32 0.0, %v371
    %v373 = vpop.f32.mrf.mxu0
    %v374 = vpop.f32.mrf.mxu0
    %v375 = vadd.f32 0.0, %v374
    %v376 = vpop.f32.mrf.mxu0
    %377 = vmatprep.mubr.bf16.mxu0 %v89
    %378 = vmatmul.mubr.bf16.gmra.mxu0 %v88
    %v379 = vpop.f32.mrf.mxu0
    %v380 = vadd.f32 0.0, %v379
    %v381 = vpop.f32.mrf.mxu0
    %v382 = vpop.f32.mrf.mxu0
    %v383 = vadd.f32 0.0, %v382
    %v384 = vpop.f32.mrf.mxu0
    %385 = vmatprep.mubr.bf16.mxu0 %v91
    %386 = vmatmul.mubr.bf16.gmra.mxu0 %v90
    %v387 = vpop.f32.mrf.mxu0
    %v388 = vadd.f32 0.0, %v387
    %v389 = vpop.f32.mrf.mxu0
    %v390 = vpop.f32.mrf.mxu0
    %v391 = vadd.f32 0.0, %v390
    %v392 = vpop.f32.mrf.mxu0
    %393 = vmatprep.mubr.bf16.mxu0 %v93
    %394 = vmatmul.mubr.bf16.gmra.mxu0 %v92
    %v395 = vpop.f32.mrf.mxu0
    %v396 = vadd.f32 0.0, %v395
    %v397 = vpop.f32.mrf.mxu0
    %v398 = vpop.f32.mrf.mxu0
    %v399 = vadd.f32 0.0, %v398
    %v400 = vpop.f32.mrf.mxu0
    %401 = vmatprep.mubr.bf16.mxu0 %v95
    %402 = vmatmul.mubr.bf16.gmra.mxu0 %v94
    %v403 = vpop.f32.mrf.mxu0
    %v404 = vadd.f32 0.0, %v403
    %v405 = vpop.f32.mrf.mxu0
    %v406 = vpop.f32.mrf.mxu0
    %v407 = vadd.f32 0.0, %v406
    %v408 = vpop.f32.mrf.mxu0
    %409 = vmatprep.mubr.bf16.mxu0 %v97
    %410 = vmatmul.mubr.bf16.gmra.mxu0 %v96
    %v411 = vpop.f32.mrf.mxu0
    %v412 = vadd.f32 0.0, %v411
    %v413 = vpop.f32.mrf.mxu0
    %v414 = vpop.f32.mrf.mxu0
    %v415 = vadd.f32 0.0, %v414
    %v416 = vpop.f32.mrf.mxu0
    %417 = vmatprep.mubr.bf16.mxu0 %v99
    %418 = vmatmul.mubr.bf16.gmra.mxu0 %v98
    %v419 = vpop.f32.mrf.mxu0
    %v420 = vadd.f32 0.0, %v419
    %v421 = vpop.f32.mrf.mxu0
    %v422 = vpop.f32.mrf.mxu0
    %v423 = vadd.f32 0.0, %v422
    %v424 = vpop.f32.mrf.mxu0
    %425 = vdwg.mxu0
    %v426 = vadd.f32 %v137, %v300
    %v427 = vadd.f32 %v138, %v303
    %v428 = vadd.f32 %v139, %v308
    %v429 = vadd.f32 %v140, %v311
    %v430 = vadd.f32 %v141, %v316
    %v431 = vadd.f32 %v142, %v319
    %v432 = vadd.f32 %v143, %v324
    %v433 = vadd.f32 %v144, %v327
    %v434 = vadd.f32 %v145, %v332
    %v435 = vadd.f32 %v146, %v335
    %v436 = vadd.f32 %v147, %v340
    %v437 = vadd.f32 %v148, %v343
    %v438 = vadd.f32 %v149, %v348
    %v439 = vadd.f32 %v150, %v351
    %v440 = vadd.f32 %v151, %v356
    %v441 = vadd.f32 %v152, %v359
    %v442 = vadd.f32 %v153, %v364
    %v443 = vadd.f32 %v154, %v367
    %v444 = vadd.f32 %v155, %v372
    %v445 = vadd.f32 %v156, %v375
    %v446 = vadd.f32 %v157, %v380
    %v447 = vadd.f32 %v158, %v383
    %v448 = vadd.f32 %v159, %v388
    %v449 = vadd.f32 %v160, %v391
    %v450 = vadd.f32 %v161, %v396
    %v451 = vadd.f32 %v162, %v399
    %v452 = vadd.f32 %v163, %v404
    %v453 = vadd.f32 %v164, %v407
    %v454 = vadd.f32 %v165, %v412
    %v455 = vadd.f32 %v166, %v415
    %v456 = vadd.f32 %v167, %v420
    %v457 = vadd.f32 %v168, %v423
    %458 = vst [vmem:[#allocation2] sm:$0xff] %v426
    %459 = vst [vmem:[#allocation2 + $0x8] sm:$0xff] %v427
    %460 = vst [vmem:[#allocation2 + $0x10] sm:$0xff] %v428
    %461 = vst [vmem:[#allocation2 + $0x18] sm:$0xff] %v429
    %462 = vst [vmem:[#allocation2 + $0x20] sm:$0xff] %v430
    %463 = vst [vmem:[#allocation2 + $0x28] sm:$0xff] %v431
    %464 = vst [vmem:[#allocation2 + $0x30] sm:$0xff] %v432
    %465 = vst [vmem:[#allocation2 + $0x38] sm:$0xff] %v433
    %466 = vst [vmem:[#allocation2 + $0x40] sm:$0xff] %v434
    %467 = vst [vmem:[#allocation2 + $0x48] sm:$0xff] %v435
    %468 = vst [vmem:[#allocation2 + $0x50] sm:$0xff] %v436
    %469 = vst [vmem:[#allocation2 + $0x58] sm:$0xff] %v437
    %470 = vst [vmem:[#allocation2 + $0x60] sm:$0xff] %v438
    %471 = vst [vmem:[#allocation2 + $0x68] sm:$0xff] %v439
    %472 = vst [vmem:[#allocation2 + $0x70] sm:$0xff] %v440
    %473 = vst [vmem:[#allocation2 + $0x78] sm:$0xff] %v441
    %474 = vst [vmem:[#allocation2 + $0x80] sm:$0xff] %v442
    %475 = vst [vmem:[#allocation2 + $0x88] sm:$0xff] %v443
    %476 = vst [vmem:[#allocation2 + $0x90] sm:$0xff] %v444
    %477 = vst [vmem:[#allocation2 + $0x98] sm:$0xff] %v445
    %478 = vst [vmem:[#allocation2 + $0xa0] sm:$0xff] %v446
    %479 = vst [vmem:[#allocation2 + $0xa8] sm:$0xff] %v447
    %480 = vst [vmem:[#allocation2 + $0xb0] sm:$0xff] %v448
    %481 = vst [vmem:[#allocation2 + $0xb8] sm:$0xff] %v449
    %482 = vst [vmem:[#allocation2 + $0xc0] sm:$0xff] %v450
    %483 = vst [vmem:[#allocation2 + $0xc8] sm:$0xff] %v451
    %484 = vst [vmem:[#allocation2 + $0xd0] sm:$0xff] %v452
    %485 = vst [vmem:[#allocation2 + $0xd8] sm:$0xff] %v453
    %486 = vst [vmem:[#allocation2 + $0xe0] sm:$0xff] %v454
    %487 = vst [vmem:[#allocation2 + $0xe8] sm:$0xff] %v455
    %488 = vst [vmem:[#allocation2 + $0xf0] sm:$0xff] %v456
    %489 = vst [vmem:[#allocation2 + $0xf8] sm:$0xff] %v457
    // Predicated region
    $region18: #{tpu_custom_call.1} parent=1 // pred_check
      %p490 = pneg %p16
    $region19: #{tpu_custom_call.1} parent=1 // pred_check_branch
      %492 = sbr.rel (%p490) target = $region21
    $region20: #{tpu_custom_call.1} parent=1 // pred_region
      %v493 = vld [vmem:[%s2] sm:$0xff]
      %v494 = vld [vmem:[%s2 + $0x8] sm:$0xff]
      %v495 = vld [vmem:[%s2 + $0x10] sm:$0xff]
      %v496 = vld [vmem:[%s2 + $0x18] sm:$0xff]
      %v497 = vld [vmem:[%s2 + $0x20] sm:$0xff]
      %v498 = vld [vmem:[%s2 + $0x28] sm:$0xff]
      %v499 = vld [vmem:[%s2 + $0x30] sm:$0xff]
      %v500 = vld [vmem:[%s2 + $0x38] sm:$0xff]
      %v501 = vld [vmem:[%s2 + $0x40] sm:$0xff]
      %v502 = vld [vmem:[%s2 + $0x48] sm:$0xff]
      %v503 = vld [vmem:[%s2 + $0x50] sm:$0xff]
      %v504 = vld [vmem:[%s2 + $0x58] sm:$0xff]
      %v505 = vld [vmem:[%s2 + $0x60] sm:$0xff]
      %v506 = vld [vmem:[%s2 + $0x68] sm:$0xff]
      %v507 = vld [vmem:[%s2 + $0x70] sm:$0xff]
      %v508 = vld [vmem:[%s2 + $0x78] sm:$0xff]
      %v509 = vld [vmem:[%s2 + $0x80] sm:$0xff]
      %v510 = vld [vmem:[%s2 + $0x88] sm:$0xff]
      %v511 = vld [vmem:[%s2 + $0x90] sm:$0xff]
      %v512 = vld [vmem:[%s2 + $0x98] sm:$0xff]
      %v513 = vld [vmem:[%s2 + $0xa0] sm:$0xff]
      %v514 = vld [vmem:[%s2 + $0xa8] sm:$0xff]
      %v515 = vld [vmem:[%s2 + $0xb0] sm:$0xff]
      %v516 = vld [vmem:[%s2 + $0xb8] sm:$0xff]
      %v517 = vld [vmem:[%s2 + $0xc0] sm:$0xff]
      %v518 = vld [vmem:[%s2 + $0xc8] sm:$0xff]
      %v519 = vld [vmem:[%s2 + $0xd0] sm:$0xff]
      %v520 = vld [vmem:[%s2 + $0xd8] sm:$0xff]
      %v521 = vld [vmem:[%s2 + $0xe0] sm:$0xff]
      %v522 = vld [vmem:[%s2 + $0xe8] sm:$0xff]
      %v523 = vld [vmem:[%s2 + $0xf0] sm:$0xff]
      %v524 = vld [vmem:[%s2 + $0xf8] sm:$0xff]
      %v525 = vld [vmem:[#allocation2] sm:$0xff]
      %v526 = vld [vmem:[#allocation2 + $0x8] sm:$0xff]
      %v527 = vld [vmem:[#allocation2 + $0x10] sm:$0xff]
      %v528 = vld [vmem:[#allocation2 + $0x18] sm:$0xff]
      %v529 = vld [vmem:[#allocation2 + $0x20] sm:$0xff]
      %v530 = vld [vmem:[#allocation2 + $0x28] sm:$0xff]
      %v531 = vld [vmem:[#allocation2 + $0x30] sm:$0xff]
      %v532 = vld [vmem:[#allocation2 + $0x38] sm:$0xff]
      %v533 = vld [vmem:[#allocation2 + $0x40] sm:$0xff]
      %v534 = vld [vmem:[#allocation2 + $0x48] sm:$0xff]
      %v535 = vld [vmem:[#allocation2 + $0x50] sm:$0xff]
      %v536 = vld [vmem:[#allocation2 + $0x58] sm:$0xff]
      %v537 = vld [vmem:[#allocation2 + $0x60] sm:$0xff]
      %v538 = vld [vmem:[#allocation2 + $0x68] sm:$0xff]
      %v539 = vld [vmem:[#allocation2 + $0x70] sm:$0xff]
      %v540 = vld [vmem:[#allocation2 + $0x78] sm:$0xff]
      %v541 = vld [vmem:[#allocation2 + $0x80] sm:$0xff]
      %v542 = vld [vmem:[#allocation2 + $0x88] sm:$0xff]
      %v543 = vld [vmem:[#allocation2 + $0x90] sm:$0xff]
      %v544 = vld [vmem:[#allocation2 + $0x98] sm:$0xff]
      %v545 = vld [vmem:[#allocation2 + $0xa0] sm:$0xff]
      %v546 = vld [vmem:[#allocation2 + $0xa8] sm:$0xff]
      %v547 = vld [vmem:[#allocation2 + $0xb0] sm:$0xff]
      %v548 = vld [vmem:[#allocation2 + $0xb8] sm:$0xff]
      %v549 = vld [vmem:[#allocation2 + $0xc0] sm:$0xff]
      %v550 = vld [vmem:[#allocation2 + $0xc8] sm:$0xff]
      %v551 = vld [vmem:[#allocation2 + $0xd0] sm:$0xff]
      %v552 = vld [vmem:[#allocation2 + $0xd8] sm:$0xff]
      %v553 = vld [vmem:[#allocation2 + $0xe0] sm:$0xff]
      %v554 = vld [vmem:[#allocation2 + $0xe8] sm:$0xff]
      %v555 = vld [vmem:[#allocation2 + $0xf0] sm:$0xff]
      %v556 = vld [vmem:[#allocation2 + $0xf8] sm:$0xff]
      %558 = vset.pattern.permute.xlu0 0
      %559 = vperm.xlu0 %558, %v493
      %v560 = vpop.permute.xlu0 %559
      %563 = vset.pattern.permute.xlu0 0
      %564 = vperm.xlu0 %563, %v494
      %v565 = vpop.permute.xlu0 %564
      %568 = vset.pattern.permute.xlu0 0
      %569 = vperm.xlu0 %568, %v495
      %v570 = vpop.permute.xlu0 %569
      %573 = vset.pattern.permute.xlu0 0
      %574 = vperm.xlu0 %573, %v496
      %v575 = vpop.permute.xlu0 %574
      %578 = vset.pattern.permute.xlu0 0
      %579 = vperm.xlu0 %578, %v497
      %v580 = vpop.permute.xlu0 %579
      %583 = vset.pattern.permute.xlu0 0
      %584 = vperm.xlu0 %583, %v498
      %v585 = vpop.permute.xlu0 %584
      %588 = vset.pattern.permute.xlu0 0
      %589 = vperm.xlu0 %588, %v499
      %v590 = vpop.permute.xlu0 %589
      %593 = vset.pattern.permute.xlu0 0
      %594 = vperm.xlu0 %593, %v500
      %v595 = vpop.permute.xlu0 %594
      %598 = vset.pattern.permute.xlu0 0
      %599 = vperm.xlu0 %598, %v501
      %v600 = vpop.permute.xlu0 %599
      %603 = vset.pattern.permute.xlu0 0
      %604 = vperm.xlu0 %603, %v502
      %v605 = vpop.permute.xlu0 %604
      %608 = vset.pattern.permute.xlu0 0
      %609 = vperm.xlu0 %608, %v503
      %v610 = vpop.permute.xlu0 %609
      %613 = vset.pattern.permute.xlu0 0
      %614 = vperm.xlu0 %613, %v504
      %v615 = vpop.permute.xlu0 %614
      %618 = vset.pattern.permute.xlu0 0
      %619 = vperm.xlu0 %618, %v505
      %v620 = vpop.permute.xlu0 %619
      %623 = vset.pattern.permute.xlu0 0
      %624 = vperm.xlu0 %623, %v506
      %v625 = vpop.permute.xlu0 %624
      %628 = vset.pattern.permute.xlu0 0
      %629 = vperm.xlu0 %628, %v507
      %v630 = vpop.permute.xlu0 %629
      %633 = vset.pattern.permute.xlu0 0
      %634 = vperm.xlu0 %633, %v508
      %v635 = vpop.permute.xlu0 %634
      %638 = vset.pattern.permute.xlu0 0
      %639 = vperm.xlu0 %638, %v509
      %v640 = vpop.permute.xlu0 %639
      %643 = vset.pattern.permute.xlu0 0
      %644 = vperm.xlu0 %643, %v510
      %v645 = vpop.permute.xlu0 %644
      %648 = vset.pattern.permute.xlu0 0
      %649 = vperm.xlu0 %648, %v511
      %v650 = vpop.permute.xlu0 %649
      %653 = vset.pattern.permute.xlu0 0
      %654 = vperm.xlu0 %653, %v512
      %v655 = vpop.permute.xlu0 %654
      %658 = vset.pattern.permute.xlu0 0
      %659 = vperm.xlu0 %658, %v513
      %v660 = vpop.permute.xlu0 %659
      %663 = vset.pattern.permute.xlu0 0
      %664 = vperm.xlu0 %663, %v514
      %v665 = vpop.permute.xlu0 %664
      %668 = vset.pattern.permute.xlu0 0
      %669 = vperm.xlu0 %668, %v515
      %v670 = vpop.permute.xlu0 %669
      %673 = vset.pattern.permute.xlu0 0
      %674 = vperm.xlu0 %673, %v516
      %v675 = vpop.permute.xlu0 %674
      %678 = vset.pattern.permute.xlu0 0
      %679 = vperm.xlu0 %678, %v517
      %v680 = vpop.permute.xlu0 %679
      %683 = vset.pattern.permute.xlu0 0
      %684 = vperm.xlu0 %683, %v518
      %v685 = vpop.permute.xlu0 %684
      %688 = vset.pattern.permute.xlu0 0
      %689 = vperm.xlu0 %688, %v519
      %v690 = vpop.permute.xlu0 %689
      %693 = vset.pattern.permute.xlu0 0
      %694 = vperm.xlu0 %693, %v520
      %v695 = vpop.permute.xlu0 %694
      %698 = vset.pattern.permute.xlu0 0
      %699 = vperm.xlu0 %698, %v521
      %v700 = vpop.permute.xlu0 %699
      %703 = vset.pattern.permute.xlu0 0
      %704 = vperm.xlu0 %703, %v522
      %v705 = vpop.permute.xlu0 %704
      %708 = vset.pattern.permute.xlu0 0
      %709 = vperm.xlu0 %708, %v523
      %v710 = vpop.permute.xlu0 %709
      %713 = vset.pattern.permute.xlu0 0
      %714 = vperm.xlu0 %713, %v524
      %v715 = vpop.permute.xlu0 %714
      %v717 = vmul.f32 %v560, %v525
      %v718 = vmul.f32 %v565, %v526
      %v719 = vmul.f32 %v570, %v527
      %v720 = vmul.f32 %v575, %v528
      %v721 = vmul.f32 %v580, %v529
      %v722 = vmul.f32 %v585, %v530
      %v723 = vmul.f32 %v590, %v531
      %v724 = vmul.f32 %v595, %v532
      %v725 = vmul.f32 %v600, %v533
      %v726 = vmul.f32 %v605, %v534
      %v727 = vmul.f32 %v610, %v535
      %v728 = vmul.f32 %v615, %v536
      %v729 = vmul.f32 %v620, %v537
      %v730 = vmul.f32 %v625, %v538
      %v731 = vmul.f32 %v630, %v539
      %v732 = vmul.f32 %v635, %v540
      %v733 = vmul.f32 %v640, %v541
      %v734 = vmul.f32 %v645, %v542
      %v735 = vmul.f32 %v650, %v543
      %v736 = vmul.f32 %v655, %v544
      %v737 = vmul.f32 %v660, %v545
      %v738 = vmul.f32 %v665, %v546
      %v739 = vmul.f32 %v670, %v547
      %v740 = vmul.f32 %v675, %v548
      %v741 = vmul.f32 %v680, %v549
      %v742 = vmul.f32 %v685, %v550
      %v743 = vmul.f32 %v690, %v551
      %v744 = vmul.f32 %v695, %v552
      %v745 = vmul.f32 %v700, %v553
      %v746 = vmul.f32 %v705, %v554
      %v747 = vmul.f32 %v710, %v555
      %v748 = vmul.f32 %v715, %v556
      %749 = vst [vmem:[#allocation2] sm:$0xff] %v717
      %750 = vst [vmem:[#allocation2 + $0x8] sm:$0xff] %v718
      %751 = vst [vmem:[#allocation2 + $0x10] sm:$0xff] %v719
      %752 = vst [vmem:[#allocation2 + $0x18] sm:$0xff] %v720
      %753 = vst [vmem:[#allocation2 + $0x20] sm:$0xff] %v721
      %754 = vst [vmem:[#allocation2 + $0x28] sm:$0xff] %v722
      %755 = vst [vmem:[#allocation2 + $0x30] sm:$0xff] %v723
      %756 = vst [vmem:[#allocation2 + $0x38] sm:$0xff] %v724
      %757 = vst [vmem:[#allocation2 + $0x40] sm:$0xff] %v725
      %758 = vst [vmem:[#allocation2 + $0x48] sm:$0xff] %v726
      %759 = vst [vmem:[#allocation2 + $0x50] sm:$0xff] %v727
      %760 = vst [vmem:[#allocation2 + $0x58] sm:$0xff] %v728
      %761 = vst [vmem:[#allocation2 + $0x60] sm:$0xff] %v729
      %762 = vst [vmem:[#allocation2 + $0x68] sm:$0xff] %v730
      %763 = vst [vmem:[#allocation2 + $0x70] sm:$0xff] %v731
      %764 = vst [vmem:[#allocation2 + $0x78] sm:$0xff] %v732
      %765 = vst [vmem:[#allocation2 + $0x80] sm:$0xff] %v733
      %766 = vst [vmem:[#allocation2 + $0x88] sm:$0xff] %v734
      %767 = vst [vmem:[#allocation2 + $0x90] sm:$0xff] %v735
      %768 = vst [vmem:[#allocation2 + $0x98] sm:$0xff] %v736
      %769 = vst [vmem:[#allocation2 + $0xa0] sm:$0xff] %v737
      %770 = vst [vmem:[#allocation2 + $0xa8] sm:$0xff] %v738
      %771 = vst [vmem:[#allocation2 + $0xb0] sm:$0xff] %v739
      %772 = vst [vmem:[#allocation2 + $0xb8] sm:$0xff] %v740
      %773 = vst [vmem:[#allocation2 + $0xc0] sm:$0xff] %v741
      %774 = vst [vmem:[#allocation2 + $0xc8] sm:$0xff] %v742
      %775 = vst [vmem:[#allocation2 + $0xd0] sm:$0xff] %v743
      %776 = vst [vmem:[#allocation2 + $0xd8] sm:$0xff] %v744
      %777 = vst [vmem:[#allocation2 + $0xe0] sm:$0xff] %v745
      %778 = vst [vmem:[#allocation2 + $0xe8] sm:$0xff] %v746
      %779 = vst [vmem:[#allocation2 + $0xf0] sm:$0xff] %v747
      %780 = vst [vmem:[#allocation2 + $0xf8] sm:$0xff] %v748
    $region21: #{tpu_custom_call.1} parent=1 // pred_fallthru
      _
    // Predicated region
    $region22: #{tpu_custom_call.1} parent=1 // pred_check
      _
    $region23: #{tpu_custom_call.1} parent=1 // pred_check_branch
      %782 = sbr.rel (0) target = $region25
    $region24: #{tpu_custom_call.1} parent=1 // pred_region
      %s784 = ssub.s32 4096, 4096
      %785 = vsyncadd [#allocation3], %s784
      %s786 = sshll.u32 [#allocation2], 4
      %s787 = int_to_ptr.vmem [resolvable:$true] %s786
      %792 = dma.vmem_to_hbm [thread:$0]  %s787, 4096, %s3, [#allocation3], 128, 128, 8
    $region25: #{tpu_custom_call.1} parent=1 // pred_fallthru
      _
    // Predicated region
    $region26: #{tpu_custom_call.1} parent=1 // pred_check
      _
    $region27: #{tpu_custom_call.1} parent=1 // pred_check_branch
      %794 = sbr.rel (0) target = $region29
    $region28: #{tpu_custom_call.1} parent=1 // pred_region
      %795 = dma.done [#allocation3], 4096
    $region29: #{tpu_custom_call.1} parent=1 // pred_fallthru
      _
    %796 = vsyncpa [#allocation3], 1

</llo_original>
